<compile_context>
chip_gen: v7x
topology: tpu7x:2x2x1
jax: 0.10.0
libtpu: 0.0.40
codegen_flags: <defaults>
</compile_context>

<pallas_src>
import functools
import math

import jax
import jax.numpy as jnp
from jax import lax
from jax.experimental import pallas as pl
from jax.experimental.pallas import tpu as pltpu

_COMPUTE_DTYPE = jnp.bfloat16   # MXU input dtype; accumulation stays float32
_LN_EPS = 1e-5                  # nn.LayerNorm default
_NEG_INF = -1e30                # finite "masked" logit (avoids NaN on fully-masked rows)


def _pick_tile(dim, target, unit):
    """Largest tile <= target that divides dim and is a multiple of `unit`
    (or the full dim when dim <= target / no such divisor exists)."""
    if dim <= target:
        return dim
    t = (target // unit) * unit
    while t >= unit:
        if dim % t == 0:
            return t
        t -= unit
    return dim


def _vmem_limit(block_bytes):
    """Scoped-VMEM request derived from the per-step block footprint (double buffered),
    clamped to a range that is safe on v5e/v6e (128 MiB) and v7x (64 MiB physical)."""
    return int(min(max(2 * block_bytes + (4 << 20), 32 << 20), 64 << 20))


# --------------------------- QKV projection -> (B, H, S, Dh) q/k/v -------------------------

def _qkv_kernel(x_ref, w_ref, b_ref, q_ref, k_ref, v_ref, *, heads, dh, inv_scale):
    x = x_ref[0].astype(_COMPUTE_DTYPE)                                  # (ts, D)
    y = jnp.dot(x, w_ref[...], preferred_element_type=jnp.float32) + b_ref[...]   # (ts, 3D) f32
    # One-time per-head split (original PyTorch column order: per head [q|k|v] of width Dh).
    # q is pre-scaled by 1/sqrt(Dh) here, in f32, so the attention kernel never scales
    # the (S, S) logits.
    for h in range(heads):
        base = 3 * dh * h
        q_ref[0, h] = (y[:, base:base + dh] * inv_scale).astype(q_ref.dtype)
        k_ref[0, h] = y[:, base + dh:base + 2 * dh].astype(k_ref.dtype)
        v_ref[0, h] = y[:, base + 2 * dh:base + 3 * dh].astype(v_ref.dtype)


def qkv_project(x, w_bf, b, heads, inv_scale, *, ts_target=256):
    B, S, D = x.shape
    dh = D // heads
    ts = _pick_tile(S, ts_target, 8)
    out_sd = jax.ShapeDtypeStruct((B, heads, S, dh), _COMPUTE_DTYPE)
    kern = functools.partial(_qkv_kernel, heads=heads, dh=dh, inv_scale=float(inv_scale))
    blk = ts * D * 4 + D * 3 * D * 2 + 3 * D * 4 + 4 * ts * 3 * D + 3 * heads * ts * dh * 2
    out_spec = pl.BlockSpec((1, heads, ts, dh), lambda b_, s_: (b_, 0, s_, 0))
    return pl.pallas_call(
        kern,
        out_shape=(out_sd, out_sd, out_sd),
        grid=(B, S // ts),
        in_specs=[
            pl.BlockSpec((1, ts, D), lambda b_, s_: (b_, s_, 0)),
            pl.BlockSpec((D, 3 * D), lambda b_, s_: (0, 0)),      # bf16 weights, resident
            pl.BlockSpec((1, 3 * D), lambda b_, s_: (0, 0)),
        ],
        out_specs=(out_spec, out_spec, out_spec),
        compiler_params=pltpu.CompilerParams(
            dimension_semantics=("parallel", "parallel"),
            vmem_limit_bytes=_vmem_limit(blk)),
    )(x, w_bf, b.reshape(1, 3 * D))


# ----------------------------------- attention core kernel ---------------------------------

def _attn_kernel(q_ref, k_ref, v_ref, pos_ref, kpad_ref, o_ref, *, max_pos_len, q_tile):
    tq = q_ref.shape[2]
    S = k_ref.shape[2]
    num_rel = 2 * max_pos_len + 1

    q = q_ref[0, 0]                       # (tq, Dh) bf16, already scaled by 1/sqrt(Dh)
    k = k_ref[0, 0]                       # (S, Dh)  bf16
    v = v_ref[0, 0]                       # (S, Dh)  bf16
    kpad = kpad_ref[0]                    # (1, S)   int32, nonzero => masked key

    ddn = (((1,), (1,)), ((), ()))        # contract last dims: a @ b^T

    # content logits (MXU)
    logits = lax.dot_general(q, k, ddn, preferred_element_type=jnp.float32)      # (tq, S)
    # relative-position logits: small MXU matmul against the (padded) pos table ...
    r = lax.dot_general(q, pos_ref[...], ddn, preferred_element_type=jnp.float32)  # (tq, Prel)

    # ... then the banded mapping rel[i, j] = clip(j - i, -L, L) + L, built in-kernel.
    q0 = pl.program_id(2) * q_tile
    row = lax.broadcasted_iota(jnp.int32, (tq, S), 0) + q0
    col = lax.broadcasted_iota(jnp.int32, (tq, S), 1)
    rel = jnp.clip(col - row, -max_pos_len, max_pos_len) + max_pos_len

    # TODO(synk): replace with a lane gather / strided-roll skew when available; a single
    # where-add per bucket, folded directly into the logits, is used for now.
    for p in range(num_rel):
        logits = logits + jnp.where(rel == p, r[:, p:p + 1], 0.0)

    logits = jnp.where(kpad > 0, _NEG_INF, logits)   # (1, S) broadcasts over query rows

    mx = jnp.max(logits, axis=-1, keepdims=True)
    e = jnp.exp(logits - mx)
    denom = jnp.sum(e, axis=-1, keepdims=True)
    p_attn = (e * pl.reciprocal(denom, approx=True)).astype(v.dtype)   # divide -> EUP recip

    o_ref[0, 0] = jnp.dot(p_attn, v, preferred_element_type=jnp.float32).astype(o_ref.dtype)


def attention(q, k, v, pos_pad, kpad, max_pos_len, *, tq_target=256):
    B, H, S, dh = q.shape
    nrp = pos_pad.shape[0]
    tq = _pick_tile(S, tq_target, 8)
    kern = functools.partial(_attn_kernel, max_pos_len=max_pos_len, q_tile=tq)
    blk = (tq * dh * 2 + 2 * S * dh * 2 + nrp * dh * 2 + S * 4 + tq * dh * 2
           + 5 * tq * S * 4)     # logits / exp / rel temporaries
    return pl.pallas_call(
        kern,
        out_shape=jax.ShapeDtypeStruct((B, H, S, dh), _COMPUTE_DTYPE),
        grid=(B, H, S // tq),
        in_specs=[
            pl.BlockSpec((1, 1, tq, dh), lambda b, h, qi: (b, h, qi, 0)),
            pl.BlockSpec((1, 1, S, dh), lambda b, h, qi: (b, h, 0, 0)),   # resident across qi
            pl.BlockSpec((1, 1, S, dh), lambda b, h, qi: (b, h, 0, 0)),
            pl.BlockSpec((nrp, dh), lambda b, h, qi: (0, 0)),             # shared pos table
            pl.BlockSpec((1, 1, S), lambda b, h, qi: (b, 0, 0)),          # key-pad mask only
        ],
        out_specs=pl.BlockSpec((1, 1, tq, dh), lambda b, h, qi: (b, h, qi, 0)),
        compiler_params=pltpu.CompilerParams(
            dimension_semantics=("parallel", "parallel", "parallel"),
            vmem_limit_bytes=_vmem_limit(blk)),
    )(q, k, v, pos_pad, kpad)


# ------------------ output projection (reduce over heads) + residual + LayerNorm -----------

def _outproj_ln_kernel(attn_ref, w_ref, b_ref, res_ref, g_ref, beta_ref, o_ref, acc_ref, *, eps):
    h = pl.program_id(2)

    @pl.when(h == 0)
    def _():
        acc_ref[...] = jnp.zeros_like(acc_ref)

    # per-head partial product accumulated in f32 (head axis is the reduction grid axis)
    acc_ref[...] += jnp.dot(attn_ref[0, 0], w_ref[0], preferred_element_type=jnp.float32)

    @pl.when(h == pl.num_programs(2) - 1)
    def _():
        s = acc_ref[...] + b_ref[...] + res_ref[0]           # bias + residual, f32
        mu = jnp.mean(s, axis=-1, keepdims=True)
        c = s - mu
        var = jnp.mean(c * c, axis=-1, keepdims=True)        # biased variance (PyTorch LN)
        o_ref[0] = (c * lax.rsqrt(var + eps)) * g_ref[...] + beta_ref[...]


def out_project_add_ln(attn, w_out_r, b_out, residual, gamma, beta, *, eps=_LN_EPS,
                       ts_target=256):
    B, H, S, dh = attn.shape
    D = w_out_r.shape[2]
    ts = _pick_tile(S, ts_target, 8)
    kern = functools.partial(_outproj_ln_kernel, eps=eps)
    blk = ts * dh * 2 + dh * D * 2 + 3 * D * 4 + 2 * ts * D * 4 + ts * D * 4
    return pl.pallas_call(
        kern,
        out_shape=jax.ShapeDtypeStruct((B, S, D), jnp.float32),
        grid=(B, S // ts, H),
        in_specs=[
            pl.BlockSpec((1, 1, ts, dh), lambda b, s, h: (b, h, s, 0)),
            pl.BlockSpec((1, dh, D), lambda b, s, h: (h, 0, 0)),
            pl.BlockSpec((1, D), lambda b, s, h: (0, 0)),
            pl.BlockSpec((1, ts, D), lambda b, s, h: (b, s, 0)),
            pl.BlockSpec((1, D), lambda b, s, h: (0, 0)),
            pl.BlockSpec((1, D), lambda b, s, h: (0, 0)),
        ],
        out_specs=pl.BlockSpec((1, ts, D), lambda b, s, h: (b, s, 0)),
        scratch_shapes=[pltpu.VMEM((ts, D), jnp.float32)],
        compiler_params=pltpu.CompilerParams(
            dimension_semantics=("parallel", "parallel", "arbitrary"),
            vmem_limit_bytes=_vmem_limit(blk)),
    )(attn, w_out_r, b_out.reshape(1, D), residual, gamma.reshape(1, D), beta.reshape(1, D))


# ----------------------------- dense (Linear [+ ReLU]) kernel ------------------------------

def _dense_kernel(x_ref, w_ref, b_ref, o_ref, *, activation):
    x = x_ref[...].astype(_COMPUTE_DTYPE)
    y = jnp.dot(x, w_ref[...], preferred_element_type=jnp.float32) + b_ref[...]
    if activation == "relu":
        y = jnp.maximum(y, 0.0)
    o_ref[...] = y.astype(o_ref.dtype)


def dense(x, w_bf, b, activation=None, out_dtype=jnp.float32, *,
          tm_target=512, tn_target=512):
    """y = act(x @ w + b); the larger of {weights, x} stays resident across the inner axis."""
    M, Din = x.shape
    Dout = w_bf.shape[1]
    tm = _pick_tile(M, tm_target, 8)
    tn = _pick_tile(Dout, tn_target, 128)
    kern = functools.partial(_dense_kernel, activation=activation)
    w_bytes = w_bf.size * w_bf.dtype.itemsize
    x_bytes = x.size * x.dtype.itemsize
    if w_bytes >= x_bytes:
        # rows innermost -> weight block index constant across the inner sweep
        grid = (Dout // tn, M // tm)
        xs = pl.BlockSpec((tm, Din), lambda j, i: (i, 0))
        ws = pl.BlockSpec((Din, tn), lambda j, i: (0, j))
        bs = pl.BlockSpec((1, tn), lambda j, i: (0, j))
        os = pl.BlockSpec((tm, tn), lambda j, i: (i, j))
    else:
        # cols innermost -> x block index constant across the inner sweep
        grid = (M // tm, Dout // tn)
        xs = pl.BlockSpec((tm, Din), lambda i, j: (i, 0))
        ws = pl.BlockSpec((Din, tn), lambda i, j: (0, j))
        bs = pl.BlockSpec((1, tn), lambda i, j: (0, j))
        os = pl.BlockSpec((tm, tn), lambda i, j: (i, j))
    blk = tm * Din * x.dtype.itemsize + Din * tn * 2 + tn * 4 + 2 * tm * tn * 4
    return pl.pallas_call(
        kern,
        out_shape=jax.ShapeDtypeStruct((M, Dout), out_dtype),
        grid=grid,
        in_specs=[xs, ws, bs],
        out_specs=os,
        compiler_params=pltpu.CompilerParams(
            dimension_semantics=("parallel", "parallel"),
            vmem_limit_bytes=_vmem_limit(blk)),
    )(x, w_bf, b.reshape(1, Dout))


# ---------------- K-tiled dense + fused bias + residual-add + LayerNorm epilogue -----------

def _dense_add_ln_kernel(x_ref, w_ref, b_ref, res_ref, g_ref, beta_ref, o_ref, acc_ref, *, eps):
    kk = pl.program_id(1)

    @pl.when(kk == 0)
    def _():
        acc_ref[...] = jnp.zeros_like(acc_ref)

    acc_ref[...] += jnp.dot(x_ref[...].astype(_COMPUTE_DTYPE), w_ref[...],
                            preferred_element_type=jnp.float32)

    @pl.when(kk == pl.num_programs(1) - 1)
    def _():
        s = acc_ref[...] + b_ref[...] + res_ref[...]
        mu = jnp.mean(s, axis=-1, keepdims=True)
        c = s - mu
        var = jnp.mean(c * c, axis=-1, keepdims=True)
        o_ref[...] = (c * lax.rsqrt(var + eps)) * g_ref[...] + beta_ref[...]


def dense_add_ln(x, w_bf, b, res, gamma, beta, *, eps=_LN_EPS, tm_target=512, tk_target=1024):
    """LN((x @ w + b) + res); K-tiled with an f32 accumulator (bounded VMEM for Din = 4D)."""
    M, Din = x.shape
    Dout = w_bf.shape[1]
    tm = _pick_tile(M, tm_target, 8)
    tk = _pick_tile(Din, tk_target, 128)
    kern = functools.partial(_dense_add_ln_kernel, eps=eps)
    blk = (tm * tk * x.dtype.itemsize + tk * Dout * 2 + 3 * Dout * 4
           + 2 * tm * Dout * 4 + tm * Dout * 4)
    return pl.pallas_call(
        kern,
        out_shape=jax.ShapeDtypeStruct((M, Dout), jnp.float32),
        grid=(M // tm, Din // tk),
        in_specs=[
            pl.BlockSpec((tm, tk), lambda i, kk: (i, kk)),
            pl.BlockSpec((tk, Dout), lambda i, kk: (kk, 0)),
            pl.BlockSpec((1, Dout), lambda i, kk: (0, 0)),
            pl.BlockSpec((tm, Dout), lambda i, kk: (i, 0)),
            pl.BlockSpec((1, Dout), lambda i, kk: (0, 0)),
            pl.BlockSpec((1, Dout), lambda i, kk: (0, 0)),
        ],
        out_specs=pl.BlockSpec((tm, Dout), lambda i, kk: (i, 0)),
        scratch_shapes=[pltpu.VMEM((tm, Dout), jnp.float32)],
        compiler_params=pltpu.CompilerParams(
            dimension_semantics=("parallel", "arbitrary"),
            vmem_limit_bytes=_vmem_limit(blk)),
    )(x, w_bf, b.reshape(1, Dout), res, gamma.reshape(1, Dout), beta.reshape(1, Dout))


# -------------------------------------- module wrapper -------------------------------------

class EncoderLayerPallas:
    """Forward pass of the PyTorch EncoderLayer (eval mode) built from Pallas TPU kernels."""

    def __init__(self, dimension, heads, dropout, max_pos_len, key):
        assert dimension % heads == 0
        self.dimension = dimension
        self.heads = heads
        self.max_pos_len = max_pos_len
        self.scale = math.sqrt(dimension / heads)
        self.dropout = dropout  # TODO(synk): dropout kept as inference-mode identity.
        dh = dimension // heads
        ks = jax.random.split(key, 9)
        self.pos_embedding = jax.random.normal(ks[0], (2 * max_pos_len + 1, dh), jnp.float32)
        # bf16 pos table, rows zero-padded to a multiple of 128 (lane-dense r matmul output)
        nr = 2 * max_pos_len + 1
        nr_pad = ((nr + 127) // 128) * 128
        self.pos_pad_bf = jnp.zeros((nr_pad, dh), _COMPUTE_DTYPE).at[:nr].set(
            self.pos_embedding.astype(_COMPUTE_DTYPE))

        def linear_init(kw, kb, fan_in, fan_out):
            bound = 1.0 / math.sqrt(fan_in)
            w = jax.random.uniform(kw, (fan_in, fan_out), jnp.float32, -bound, bound)
            b = jax.random.uniform(kb, (fan_out,), jnp.float32, -bound, bound)
            return w, b

        self.w_in, self.b_in = linear_init(ks[1], ks[2], dimension, 3 * dimension)
        self.w_out, self.b_out = linear_init(ks[3], ks[4], dimension, dimension)
        self.w_ff1, self.b_ff1 = linear_init(ks[5], ks[6], dimension, 4 * dimension)
        self.w_ff2, self.b_ff2 = linear_init(ks[7], ks[8], 4 * dimension, dimension)

        # Weights are pre-cast to bf16 once (halves weight HBM traffic / VMEM footprint).
        self.w_in_bf = self.w_in.astype(_COMPUTE_DTYPE)
        self.w_out_r_bf = self.w_out.reshape(heads, dh, dimension).astype(_COMPUTE_DTYPE)
        self.w_ff1_bf = self.w_ff1.astype(_COMPUTE_DTYPE)
        self.w_ff2_bf = self.w_ff2.astype(_COMPUTE_DTYPE)

        self.ln1_g = jnp.ones((dimension,), jnp.float32)
        self.ln1_b = jnp.zeros((dimension,), jnp.float32)
        self.ln2_g = jnp.ones((dimension,), jnp.float32)
        self.ln2_b = jnp.zeros((dimension,), jnp.float32)

    def __call__(self, x, key_padding_mask=None):
        B, S, D = x.shape
        H, L = self.heads, self.max_pos_len
        if key_padding_mask is None:
            kpad = jnp.zeros((B, 1, S), jnp.int32)
        else:
            kpad = key_padding_mask.astype(jnp.int32).reshape(B, 1, S)
        inv_scale = 1.0 / self.scale

        # --- attention sublayer (+ fused residual + LayerNorm in the out-projection) ---
        q, k, v = qkv_project(x, self.w_in_bf, self.b_in, H, inv_scale)      # bf16 (B,H,S,Dh)
        attn = attention(q, k, v, self.pos_pad_bf, kpad, L)                  # bf16 (B,H,S,Dh)
        h1 = out_project_add_ln(attn, self.w_out_r_bf, self.b_out, x,
                                self.ln1_g, self.ln1_b)                      # f32 (B,S,D)
        h1_2d = h1.reshape(B * S, D)

        # --- feed-forward sublayer (+ fused residual + LayerNorm in ff2) ---
        f = dense(h1_2d, self.w_ff1_bf, self.b_ff1, activation="relu",
                  out_dtype=_COMPUTE_DTYPE)                                  # bf16 (M,4D)
        out = dense_add_ln(f, self.w_ff2_bf, self.b_ff2, h1_2d,
                           self.ln2_g, self.ln2_b)                           # f32 (M,D)
        return out.reshape(B, S, D)


# ------------------------------------ pure-JAX references ----------------------------------

def _ln_ref(x, g, b, eps=_LN_EPS):
    mu = jnp.mean(x, axis=-1, keepdims=True)
    c = x - mu
    var = jnp.mean(c * c, axis=-1, keepdims=True)
    return c * lax.rsqrt(var + eps) * g + b


def reference_f32(layer, x, key_padding_mask):
    """Literal float32 port of the PyTorch EncoderLayer forward (eval mode)."""
    B, S, D = x.shape
    H, Dh, L = layer.heads, D // layer.heads, layer.max_pos_len
    x2 = x.reshape(B * S, D)
    qkv = (x2 @ layer.w_in + layer.b_in).reshape(B, S, H, 3 * Dh).transpose(0, 2, 1, 3)
    q, k, v = jnp.split(qkv, 3, axis=3)
    logits = jnp.einsum('bhqd,bhkd->bhqk', q, k)
    idx = jnp.clip(jnp.arange(S)[None, :] - jnp.arange(S)[:, None], -L, L) + L
    pos_logits = jnp.einsum('bhqd,qkd->bhqk', q, layer.pos_embedding[idx])
    logits = (logits + pos_logits) / layer.scale
    if key_padding_mask is not None:
        logits = jnp.where(key_padding_mask[:, None, None, :], -jnp.inf, logits)
    p = jax.nn.softmax(logits, axis=-1)
    comb = jnp.einsum('bhqk,bhkd->bhqd', p, v)
    attn = comb.transpose(0, 2, 1, 3).reshape(B * S, D) @ layer.w_out + layer.b_out
    h1 = _ln_ref(attn + x2, layer.ln1_g, layer.ln1_b)
    f = jnp.maximum(h1 @ layer.w_ff1 + layer.b_ff1, 0.0) @ layer.w_ff2 + layer.b_ff2
    return _ln_ref(f + h1, layer.ln2_g, layer.ln2_b).reshape(B, S, D)


def reference_matched(layer, x, key_padding_mask):
    """Pure-JAX mirror of the Pallas pipeline (same bf16 cast points) for a tight check."""
    bf = _COMPUTE_DTYPE
    B, S, D = x.shape
    H, Dh, L = layer.heads, D // layer.heads, layer.max_pos_len
    inv_scale = 1.0 / layer.scale
    x2 = x.reshape(B * S, D)

    y = jnp.dot(x2.astype(bf), layer.w_in_bf,
                preferred_element_type=jnp.float32) + layer.b_in
    y = y.reshape(B, S, 3 * D)
    idx = jnp.clip(jnp.arange(S)[None, :] - jnp.arange(S)[:, None], -L, L) + L

    acc = jnp.zeros((B, S, D), jnp.float32)
    for h in range(H):
        base = 3 * Dh * h
        q = (y[..., base:base + Dh] * inv_scale).astype(bf)
        k = y[..., base + Dh:base + 2 * Dh].astype(bf)
        v = y[..., base + 2 * Dh:base + 3 * Dh].astype(bf)
        logits = jnp.einsum('bqd,bkd->bqk', q, k, preferred_element_type=jnp.float32)
        r = jnp.einsum('bqd,pd->bqp', q, layer.pos_embedding.astype(bf),
                       preferred_element_type=jnp.float32)
        pos_logits = jnp.take_along_axis(r, jnp.broadcast_to(idx[None], (B, S, S)), axis=2)
        logits = logits + pos_logits
        if key_padding_mask is not None:
            logits = jnp.where(key_padding_mask[:, None, :], _NEG_INF, logits)
        mx = jnp.max(logits, axis=-1, keepdims=True)
        e = jnp.exp(logits - mx)
        pa = (e / jnp.sum(e, axis=-1, keepdims=True)).astype(bf)
        o_h = jnp.einsum('bqk,bkd->bqd', pa, v,
                         preferred_element_type=jnp.float32).astype(bf)
        acc = acc + jnp.einsum('bqd,de->bqe', o_h, layer.w_out_r_bf[h],
                               preferred_element_type=jnp.float32)

    h1 = _ln_ref(acc.reshape(B * S, D) + layer.b_out + x2, layer.ln1_g, layer.ln1_b)
    f = jnp.maximum(jnp.dot(h1.astype(bf), layer.w_ff1_bf,
                            preferred_element_type=jnp.float32) + layer.b_ff1, 0.0).astype(bf)
    out = jnp.dot(f, layer.w_ff2_bf, preferred_element_type=jnp.float32) + layer.b_ff2
    return _ln_ref(out + h1, layer.ln2_g, layer.ln2_b).reshape(B, S, D)


if __name__ == "__main__":
    key = jax.random.PRNGKey(0)
    k_param, k_x = jax.random.split(key)

    B, S, D, H, MAX_POS, DROPOUT = 2, 8, 32, 4, 6, 0.1
    layer = EncoderLayerPallas(D, H, DROPOUT, MAX_POS, k_param)
    x = jax.random.normal(k_x, (B, S, D), jnp.float32)

    # key-padding mask (True = masked): batch 1 hides its last two key positions.
    key_pad = jnp.zeros((B, S), dtype=bool).at[1, S - 2:].set(True)

    out = layer(x, key_pad)
    jax.block_until_ready(out)

    # Tight check vs a matched-precision (bf16-matmul) pure-JAX mirror of the pipeline.
    # (Small slack for the EUP approx-reciprocal used in the in-kernel softmax.)
    ref_tight = reference_matched(layer, x, key_pad)
    err_tight = float(jnp.max(jnp.abs(out - ref_tight)))
    assert jnp.allclose(out, ref_tight, atol=5e-3, rtol=5e-3), err_tight

    # Loose sanity check vs the literal float32 module semantics (bf16 matmul tolerance);
    # the matched-precision check above is the meaningful one.
    ref_f32 = reference_f32(layer, x, key_pad)
    err_f32 = float(jnp.max(jnp.abs(out - ref_f32)))
    assert jnp.allclose(out, ref_f32, atol=1e-1, rtol=1e-1), err_f32

    print("KERNEL_OK")
</pallas_src>

<mosaic_0001>
module attributes {stable_mosaic.version = 11 : i64} {
  func.func @_qkv_kernel(%arg0: i32, %arg1: i32, %arg2: memref<1x8x32xf32, #tpu.memory_space<vmem>>, %arg3: memref<32x96xbf16, #tpu.memory_space<vmem>>, %arg4: memref<1x96xf32, #tpu.memory_space<vmem>>, %arg5: memref<1x4x8x8xbf16, #tpu.memory_space<vmem>>, %arg6: memref<1x4x8x8xbf16, #tpu.memory_space<vmem>>, %arg7: memref<1x4x8x8xbf16, #tpu.memory_space<vmem>>) attributes {dimension_semantics = [#tpu.dimension_semantics<parallel>, #tpu.dimension_semantics<parallel>], iteration_bounds = array<i64: 2, 1>, scalar_prefetch = 0 : i64, scratch_operands = 0 : i64, tpu.core_type = #tpu.core_type<tc>, window_params = [{transform_indices = @transform_0, window_bounds = array<i64: 1, 8, 32>}, {pipeline_mode = #tpu.pipeline_mode<synchronous>, transform_indices = @transform_1, window_bounds = array<i64: 32, 96>}, {pipeline_mode = #tpu.pipeline_mode<synchronous>, transform_indices = @transform_2, window_bounds = array<i64: 1, 96>}, {transform_indices = @transform_3, window_bounds = array<i64: 1, 4, 8, 8>}, {transform_indices = @transform_4, window_bounds = array<i64: 1, 4, 8, 8>}, {transform_indices = @transform_5, window_bounds = array<i64: 1, 4, 8, 8>}]} {
    %c0 = arith.constant 0 : index
    %c0_0 = arith.constant 0 : index
    %c0_1 = arith.constant 0 : index
    %0 = vector.load %arg2[%c0, %c0_0, %c0_1] : memref<1x8x32xf32, #tpu.memory_space<vmem>>, vector<1x8x32xf32>
    %1 = vector.shape_cast %0 : vector<1x8x32xf32> to vector<8x32xf32>
    %2 = arith.truncf %1 : vector<8x32xf32> to vector<8x32xbf16>
    %c0_2 = arith.constant 0 : index
    %c0_3 = arith.constant 0 : index
    %3 = vector.load %arg3[%c0_2, %c0_3] : memref<32x96xbf16, #tpu.memory_space<vmem>>, vector<32x96xbf16>
    %cst = arith.constant dense<0.000000e+00> : vector<8x96xf32>
    %4 = tpu.matmul %2, %3, %cst {dimension_numbers = #tpu.dot_dimension_numbers<[1], [0], [0], [1], [0, 0, 1, 1], [], []>} : vector<8x32xbf16>, vector<32x96xbf16>, vector<8x96xf32> -> vector<8x96xf32>
    %c0_4 = arith.constant 0 : index
    %c0_5 = arith.constant 0 : index
    %5 = vector.load %arg4[%c0_4, %c0_5] : memref<1x96xf32, #tpu.memory_space<vmem>>, vector<1x96xf32>
    %6 = vector.broadcast %5 : vector<1x96xf32> to vector<8x96xf32>
    %7 = arith.addf %4, %6 : vector<8x96xf32>
    %8 = vector.extract_strided_slice %7 {offsets = [0, 0], sizes = [8, 8], strides = [1, 1]} : vector<8x96xf32> to vector<8x8xf32>
    %cst_6 = arith.constant 0.353553385 : f32
    %9 = vector.broadcast %cst_6 : f32 to vector<8x8xf32>
    %10 = arith.mulf %8, %9 : vector<8x8xf32>
    %11 = arith.truncf %10 : vector<8x8xf32> to vector<8x8xbf16>
    %c0_7 = arith.constant 0 : index
    %c0_8 = arith.constant 0 : index
    %c0_9 = arith.constant 0 : index
    %c0_10 = arith.constant 0 : index
    %12 = vector.load %arg5[%c0_7, %c0_8, %c0_9, %c0_10] : memref<1x4x8x8xbf16, #tpu.memory_space<vmem>>, vector<1x1x8x8xbf16>
    %13 = vector.shape_cast %12 : vector<1x1x8x8xbf16> to vector<8x8xbf16>
    %14 = vector.shape_cast %11 : vector<8x8xbf16> to vector<1x1x8x8xbf16>
    tpu.vector_store %arg5[%c0_7, %c0_8, %c0_9, %c0_10], %14 {strides = array<i32>} : memref<1x4x8x8xbf16, #tpu.memory_space<vmem>>, vector<1x1x8x8xbf16>,
    %15 = vector.extract_strided_slice %7 {offsets = [0, 8], sizes = [8, 8], strides = [1, 1]} : vector<8x96xf32> to vector<8x8xf32>
    %16 = arith.truncf %15 : vector<8x8xf32> to vector<8x8xbf16>
    %c0_11 = arith.constant 0 : index
    %c0_12 = arith.constant 0 : index
    %c0_13 = arith.constant 0 : index
    %c0_14 = arith.constant 0 : index
    %17 = vector.load %arg6[%c0_11, %c0_12, %c0_13, %c0_14] : memref<1x4x8x8xbf16, #tpu.memory_space<vmem>>, vector<1x1x8x8xbf16>
    %18 = vector.shape_cast %17 : vector<1x1x8x8xbf16> to vector<8x8xbf16>
    %19 = vector.shape_cast %16 : vector<8x8xbf16> to vector<1x1x8x8xbf16>
    tpu.vector_store %arg6[%c0_11, %c0_12, %c0_13, %c0_14], %19 {strides = array<i32>} : memref<1x4x8x8xbf16, #tpu.memory_space<vmem>>, vector<1x1x8x8xbf16>,
    %20 = vector.extract_strided_slice %7 {offsets = [0, 16], sizes = [8, 8], strides = [1, 1]} : vector<8x96xf32> to vector<8x8xf32>
    %21 = arith.truncf %20 : vector<8x8xf32> to vector<8x8xbf16>
    %c0_15 = arith.constant 0 : index
    %c0_16 = arith.constant 0 : index
    %c0_17 = arith.constant 0 : index
    %c0_18 = arith.constant 0 : index
    %22 = vector.load %arg7[%c0_15, %c0_16, %c0_17, %c0_18] : memref<1x4x8x8xbf16, #tpu.memory_space<vmem>>, vector<1x1x8x8xbf16>
    %23 = vector.shape_cast %22 : vector<1x1x8x8xbf16> to vector<8x8xbf16>
    %24 = vector.shape_cast %21 : vector<8x8xbf16> to vector<1x1x8x8xbf16>
    tpu.vector_store %arg7[%c0_15, %c0_16, %c0_17, %c0_18], %24 {strides = array<i32>} : memref<1x4x8x8xbf16, #tpu.memory_space<vmem>>, vector<1x1x8x8xbf16>,
    %25 = vector.extract_strided_slice %7 {offsets = [0, 24], sizes = [8, 8], strides = [1, 1]} : vector<8x96xf32> to vector<8x8xf32>
    %cst_19 = arith.constant 0.353553385 : f32
    %26 = vector.broadcast %cst_19 : f32 to vector<8x8xf32>
    %27 = arith.mulf %25, %26 : vector<8x8xf32>
    %28 = arith.truncf %27 : vector<8x8xf32> to vector<8x8xbf16>
    %c0_20 = arith.constant 0 : index
    %c1 = arith.constant 1 : index
    %c0_21 = arith.constant 0 : index
    %c0_22 = arith.constant 0 : index
    %29 = vector.load %arg5[%c0_20, %c1, %c0_21, %c0_22] : memref<1x4x8x8xbf16, #tpu.memory_space<vmem>>, vector<1x1x8x8xbf16>
    %30 = vector.shape_cast %29 : vector<1x1x8x8xbf16> to vector<8x8xbf16>
    %31 = vector.shape_cast %28 : vector<8x8xbf16> to vector<1x1x8x8xbf16>
    tpu.vector_store %arg5[%c0_20, %c1, %c0_21, %c0_22], %31 {strides = array<i32>} : memref<1x4x8x8xbf16, #tpu.memory_space<vmem>>, vector<1x1x8x8xbf16>,
    %32 = vector.extract_strided_slice %7 {offsets = [0, 32], sizes = [8, 8], strides = [1, 1]} : vector<8x96xf32> to vector<8x8xf32>
    %33 = arith.truncf %32 : vector<8x8xf32> to vector<8x8xbf16>
    %c0_23 = arith.constant 0 : index
    %c1_24 = arith.constant 1 : index
    %c0_25 = arith.constant 0 : index
    %c0_26 = arith.constant 0 : index
    %34 = vector.load %arg6[%c0_23, %c1_24, %c0_25, %c0_26] : memref<1x4x8x8xbf16, #tpu.memory_space<vmem>>, vector<1x1x8x8xbf16>
    %35 = vector.shape_cast %34 : vector<1x1x8x8xbf16> to vector<8x8xbf16>
    %36 = vector.shape_cast %33 : vector<8x8xbf16> to vector<1x1x8x8xbf16>
    tpu.vector_store %arg6[%c0_23, %c1_24, %c0_25, %c0_26], %36 {strides = array<i32>} : memref<1x4x8x8xbf16, #tpu.memory_space<vmem>>, vector<1x1x8x8xbf16>,
    %37 = vector.extract_strided_slice %7 {offsets = [0, 40], sizes = [8, 8], strides = [1, 1]} : vector<8x96xf32> to vector<8x8xf32>
    %38 = arith.truncf %37 : vector<8x8xf32> to vector<8x8xbf16>
    %c0_27 = arith.constant 0 : index
    %c1_28 = arith.constant 1 : index
    %c0_29 = arith.constant 0 : index
    %c0_30 = arith.constant 0 : index
    %39 = vector.load %arg7[%c0_27, %c1_28, %c0_29, %c0_30] : memref<1x4x8x8xbf16, #tpu.memory_space<vmem>>, vector<1x1x8x8xbf16>
    %40 = vector.shape_cast %39 : vector<1x1x8x8xbf16> to vector<8x8xbf16>
    %41 = vector.shape_cast %38 : vector<8x8xbf16> to vector<1x1x8x8xbf16>
    tpu.vector_store %arg7[%c0_27, %c1_28, %c0_29, %c0_30], %41 {strides = array<i32>} : memref<1x4x8x8xbf16, #tpu.memory_space<vmem>>, vector<1x1x8x8xbf16>,
    %42 = vector.extract_strided_slice %7 {offsets = [0, 48], sizes = [8, 8], strides = [1, 1]} : vector<8x96xf32> to vector<8x8xf32>
    %cst_31 = arith.constant 0.353553385 : f32
    %43 = vector.broadcast %cst_31 : f32 to vector<8x8xf32>
    %44 = arith.mulf %42, %43 : vector<8x8xf32>
    %45 = arith.truncf %44 : vector<8x8xf32> to vector<8x8xbf16>
    %c0_32 = arith.constant 0 : index
    %c2 = arith.constant 2 : index
    %c0_33 = arith.constant 0 : index
    %c0_34 = arith.constant 0 : index
    %46 = vector.load %arg5[%c0_32, %c2, %c0_33, %c0_34] : memref<1x4x8x8xbf16, #tpu.memory_space<vmem>>, vector<1x1x8x8xbf16>
    %47 = vector.shape_cast %46 : vector<1x1x8x8xbf16> to vector<8x8xbf16>
    %48 = vector.shape_cast %45 : vector<8x8xbf16> to vector<1x1x8x8xbf16>
    tpu.vector_store %arg5[%c0_32, %c2, %c0_33, %c0_34], %48 {strides = array<i32>} : memref<1x4x8x8xbf16, #tpu.memory_space<vmem>>, vector<1x1x8x8xbf16>,
    %49 = vector.extract_strided_slice %7 {offsets = [0, 56], sizes = [8, 8], strides = [1, 1]} : vector<8x96xf32> to vector<8x8xf32>
    %50 = arith.truncf %49 : vector<8x8xf32> to vector<8x8xbf16>
    %c0_35 = arith.constant 0 : index
    %c2_36 = arith.constant 2 : index
    %c0_37 = arith.constant 0 : index
    %c0_38 = arith.constant 0 : index
    %51 = vector.load %arg6[%c0_35, %c2_36, %c0_37, %c0_38] : memref<1x4x8x8xbf16, #tpu.memory_space<vmem>>, vector<1x1x8x8xbf16>
    %52 = vector.shape_cast %51 : vector<1x1x8x8xbf16> to vector<8x8xbf16>
    %53 = vector.shape_cast %50 : vector<8x8xbf16> to vector<1x1x8x8xbf16>
    tpu.vector_store %arg6[%c0_35, %c2_36, %c0_37, %c0_38], %53 {strides = array<i32>} : memref<1x4x8x8xbf16, #tpu.memory_space<vmem>>, vector<1x1x8x8xbf16>,
    %54 = vector.extract_strided_slice %7 {offsets = [0, 64], sizes = [8, 8], strides = [1, 1]} : vector<8x96xf32> to vector<8x8xf32>
    %55 = arith.truncf %54 : vector<8x8xf32> to vector<8x8xbf16>
    %c0_39 = arith.constant 0 : index
    %c2_40 = arith.constant 2 : index
    %c0_41 = arith.constant 0 : index
    %c0_42 = arith.constant 0 : index
    %56 = vector.load %arg7[%c0_39, %c2_40, %c0_41, %c0_42] : memref<1x4x8x8xbf16, #tpu.memory_space<vmem>>, vector<1x1x8x8xbf16>
    %57 = vector.shape_cast %56 : vector<1x1x8x8xbf16> to vector<8x8xbf16>
    %58 = vector.shape_cast %55 : vector<8x8xbf16> to vector<1x1x8x8xbf16>
    tpu.vector_store %arg7[%c0_39, %c2_40, %c0_41, %c0_42], %58 {strides = array<i32>} : memref<1x4x8x8xbf16, #tpu.memory_space<vmem>>, vector<1x1x8x8xbf16>,
    %59 = vector.extract_strided_slice %7 {offsets = [0, 72], sizes = [8, 8], strides = [1, 1]} : vector<8x96xf32> to vector<8x8xf32>
    %cst_43 = arith.constant 0.353553385 : f32
    %60 = vector.broadcast %cst_43 : f32 to vector<8x8xf32>
    %61 = arith.mulf %59, %60 : vector<8x8xf32>
    %62 = arith.truncf %61 : vector<8x8xf32> to vector<8x8xbf16>
    %c0_44 = arith.constant 0 : index
    %c3 = arith.constant 3 : index
    %c0_45 = arith.constant 0 : index
    %c0_46 = arith.constant 0 : index
    %63 = vector.load %arg5[%c0_44, %c3, %c0_45, %c0_46] : memref<1x4x8x8xbf16, #tpu.memory_space<vmem>>, vector<1x1x8x8xbf16>
    %64 = vector.shape_cast %63 : vector<1x1x8x8xbf16> to vector<8x8xbf16>
    %65 = vector.shape_cast %62 : vector<8x8xbf16> to vector<1x1x8x8xbf16>
    tpu.vector_store %arg5[%c0_44, %c3, %c0_45, %c0_46], %65 {strides = array<i32>} : memref<1x4x8x8xbf16, #tpu.memory_space<vmem>>, vector<1x1x8x8xbf16>,
    %66 = vector.extract_strided_slice %7 {offsets = [0, 80], sizes = [8, 8], strides = [1, 1]} : vector<8x96xf32> to vector<8x8xf32>
    %67 = arith.truncf %66 : vector<8x8xf32> to vector<8x8xbf16>
    %c0_47 = arith.constant 0 : index
    %c3_48 = arith.constant 3 : index
    %c0_49 = arith.constant 0 : index
    %c0_50 = arith.constant 0 : index
    %68 = vector.load %arg6[%c0_47, %c3_48, %c0_49, %c0_50] : memref<1x4x8x8xbf16, #tpu.memory_space<vmem>>, vector<1x1x8x8xbf16>
    %69 = vector.shape_cast %68 : vector<1x1x8x8xbf16> to vector<8x8xbf16>
    %70 = vector.shape_cast %67 : vector<8x8xbf16> to vector<1x1x8x8xbf16>
    tpu.vector_store %arg6[%c0_47, %c3_48, %c0_49, %c0_50], %70 {strides = array<i32>} : memref<1x4x8x8xbf16, #tpu.memory_space<vmem>>, vector<1x1x8x8xbf16>,
    %71 = vector.extract_strided_slice %7 {offsets = [0, 88], sizes = [8, 8], strides = [1, 1]} : vector<8x96xf32> to vector<8x8xf32>
    %72 = arith.truncf %71 : vector<8x8xf32> to vector<8x8xbf16>
    %c0_51 = arith.constant 0 : index
    %c3_52 = arith.constant 3 : index
    %c0_53 = arith.constant 0 : index
    %c0_54 = arith.constant 0 : index
    %73 = vector.load %arg7[%c0_51, %c3_52, %c0_53, %c0_54] : memref<1x4x8x8xbf16, #tpu.memory_space<vmem>>, vector<1x1x8x8xbf16>
    %74 = vector.shape_cast %73 : vector<1x1x8x8xbf16> to vector<8x8xbf16>
    %75 = vector.shape_cast %72 : vector<8x8xbf16> to vector<1x1x8x8xbf16>
    tpu.vector_store %arg7[%c0_51, %c3_52, %c0_53, %c0_54], %75 {strides = array<i32>} : memref<1x4x8x8xbf16, #tpu.memory_space<vmem>>, vector<1x1x8x8xbf16>,
    return
  }
  func.func @transform_0(%arg0: i32, %arg1: i32) -> (i32, i32, i32) {
    %c0_i32 = arith.constant 0 : i32
    %c0_i32_0 = arith.constant 0 : i32
    return %arg0, %arg1, %c0_i32 : i32, i32, i32
  }
  func.func @transform_1(%arg0: i32, %arg1: i32) -> (i32, i32) {
    %c0_i32 = arith.constant 0 : i32
    %c0_i32_0 = arith.constant 0 : i32
    %c0_i32_1 = arith.constant 0 : i32
    return %c0_i32, %c0_i32_0 : i32, i32
  }
  func.func @transform_2(%arg0: i32, %arg1: i32) -> (i32, i32) {
    %c0_i32 = arith.constant 0 : i32
    %c0_i32_0 = arith.constant 0 : i32
    %c0_i32_1 = arith.constant 0 : i32
    return %c0_i32, %c0_i32_0 : i32, i32
  }
  func.func @transform_3(%arg0: i32, %arg1: i32) -> (i32, i32, i32, i32) {
    %c0_i32 = arith.constant 0 : i32
    %c0_i32_0 = arith.constant 0 : i32
    %c0_i32_1 = arith.constant 0 : i32
    return %arg0, %c0_i32, %arg1, %c0_i32_0 : i32, i32, i32, i32
  }
  func.func @transform_4(%arg0: i32, %arg1: i32) -> (i32, i32, i32, i32) {
    %c0_i32 = arith.constant 0 : i32
    %c0_i32_0 = arith.constant 0 : i32
    %c0_i32_1 = arith.constant 0 : i32
    return %arg0, %c0_i32, %arg1, %c0_i32_0 : i32, i32, i32, i32
  }
  func.func @transform_5(%arg0: i32, %arg1: i32) -> (i32, i32, i32, i32) {
    %c0_i32 = arith.constant 0 : i32
    %c0_i32_0 = arith.constant 0 : i32
    %c0_i32_1 = arith.constant 0 : i32
    return %arg0, %c0_i32, %arg1, %c0_i32_0 : i32, i32, i32, i32
  }
}

</mosaic_0001>

<llo_original>
// kernel: tpu_custom_call.1
$region0: #{tpu_custom_call.1}
  #allocation0 [shape = 'u32[]', space=smem, size = 0x4, offset = 0x4, fixed_abs, tag = 'smem constant byte address 0x4 - core index']
  #allocation1 [shape = 'u32[144,128]{1,0:T(1,128)}', space=vmem, size = 0x12000, scoped, tag = 'internal scratch']
  %s0 = inlined_call_operand.hbm [shape: f32[2,8,32], index: 0, kind: input, shape index: {}]
  %s1 = inlined_call_operand.hbm [shape: bf16[32,96], index: 1, kind: input, shape index: {}]
  %s2 = inlined_call_operand.vmem [shape: f32[1,96], index: 2, kind: input, shape index: {}]
  %s3 = inlined_call_operand.hbm [shape: bf16[2,4,8,8], index: 3, kind: output, shape index: {0}]
  %s4 = inlined_call_operand.hbm [shape: bf16[2,4,8,8], index: 4, kind: output, shape index: {1}]
  %s5 = inlined_call_operand.hbm [shape: bf16[2,4,8,8], index: 5, kind: output, shape index: {2}]
  %6 = xla_tuple %s3, %s4, %s5
  %s7 = sld [smem:[#allocation0]]
  $region69: #{tpu_custom_call.1} parent=0
    _
  %s9 = ssub.s32 1, %s7
  %s10 = scalar_select 0, %s9, %s7
  $region1: #{tpu_custom_call.1} parent=0
    #allocation2 [shape = 'u8[8192]{0}', space=vmem, size = 0x2000, scoped, tag = 'input window, operand 0']
    #allocation3 [shape = 's32[2]{0}', space=sflag, size = 0x8, scoped, tag = 'scoped memory for tpu_custom_call.1']
    #allocation4 [shape = 's32[2]{0}', space=sflag, size = 0x8, scoped, tag = 'scoped memory for tpu_custom_call.1']
    #allocation5 [shape = 'u8[8192]{0}', space=vmem, size = 0x2000, scoped, tag = 'input window, operand 1, single buffered']
    #allocation6 [shape = 's32[1]{0}', space=sflag, size = 0x4, scoped, tag = 'scoped memory for tpu_custom_call.1']
    #allocation7 [shape = 'u8[16384]{0}', space=vmem, size = 0x4000, scoped, tag = 'output window, operand 0']
    #allocation8 [shape = 'u8[16384]{0}', space=vmem, size = 0x4000, scoped, tag = 'output window, operand 1']
    #allocation9 [shape = 's32[2]{0}', space=sflag, size = 0x8, scoped, tag = 'scoped memory for tpu_custom_call.1']
    #allocation10 [shape = 'u8[16384]{0}', space=vmem, size = 0x4000, scoped, tag = 'output window, operand 2']
    %11 = vsyncpa [#allocation3], 0
    %s12 = scalar_lea.sflag [#allocation3], 1
    %13 = vsyncpa %s12, 0
    %14 = vsyncpa [#allocation6], 0
    %15 = vsyncpa [#allocation4], 0
    %s16 = scalar_lea.sflag [#allocation4], 1
    %17 = vsyncpa %s16, 0
    %18 = vsyncpa [#allocation9], 0
    %s19 = scalar_lea.sflag [#allocation9], 1
    %20 = vsyncpa %s19, 0
    loop: start=0, step=1, limit=4
    $region2: #{tpu_custom_call.1} parent=1 // loop_pre_header
      _
    $region3: #{tpu_custom_call.1} parent=1 // loop_header
      %s22 = sphi 0, %s26
      %p23 = scmp.ge.s32.totalorder %s22, 4
      %s29 = sphi 0, %s41
      %s30 = sphi 0, %s37
      %s31 = sphi 0, %s29
      %s32 = sphi 0, %s30
      %s33 = sphi 0, %s31
      %s34 = sphi 0, %s32
      %s46 = sphi 0, %s48
      %s49 = sphi 0, %s46
      %s50 = sphi 0, %s49
      %s66 = sphi 0, %s50
      %s70 = sphi 0, %s70
      %s72 = sphi 0, %s70
      %s73 = sphi 0, %s72
      %s87 = sphi 0, %s73
      %s91 = sphi 0, %s91
      %s93 = sphi 0, %s91
      %s94 = sphi 0, %s93
      %s108 = sphi 0, %s94
      %s116 = sphi 0, %s118
      %s119 = sphi 0, %s116
      %s120 = sphi 0, %s119
      %s136 = sphi 0, %s120
      %s144 = sphi 0, %s146
      %s147 = sphi 0, %s144
      %s148 = sphi 0, %s147
      %s164 = sphi 0, %s148
      %s172 = sphi 0, %s174
      %s175 = sphi 0, %s172
      %s176 = sphi 0, %s175
      %s192 = sphi 0, %s176
    $region4: #{tpu_custom_call.1} parent=1 // loop_header_branch
      %25 = sbr.rel (%p23) target = $region8
    $region5: #{tpu_custom_call.1} parent=1 // loop_body
      %s27 = ssub.s32 %s22, 1
      %s28 = ssub.s32 %s22, 2
      %s35 = sadd.s32 1, %s30
      %p36 = scmp.ge.s32.totalorder %s35, 1
      %s37 = scalar_select %p36, 0, %s35
      %s38 = sadd.s32 1, %s29
      %s39 = scalar_select %p36, %s38, %s29
      %p40 = scmp.ge.s32.totalorder %s39, 2
      %s41 = scalar_select %p40, 0, %s39
      %s42 = ssub.s32 %s29, %s41
      %s43 = ssub.s32 %s30, %s37
      %s44 = sor.u32 %s42, %s43
      %p45 = scmp.eq.s32.totalorder %s44, 0
      %s47 = sadd.s32 %s46, 1
      %s48 = scalar_select %p45, %s46, %s47
      %p51 = pneg %p45
      %p52 = scmp.eq.s32.totalorder %s22, 1
      %p53 = por %p51, %p52
      %p54 = scmp.ne.s32.totalorder %s46, %s49
      %p55 = scmp.eq.s32.totalorder %s22, 0
      %p56 = por %p54, %p55
      %p57 = scmp.ne.s32.totalorder %s46, %s49
      %p58 = scmp.eq.s32.totalorder %s27, 1
      %p59 = por %p57, %p58
      %p60 = scmp.ne.s32.totalorder %s49, %s50
      %p61 = scmp.eq.s32.totalorder %s27, 0
      %p62 = por %p60, %p61
      %p63 = scmp.ne.s32.totalorder %s49, %s50
      %p64 = scmp.eq.s32.totalorder %s28, 1
      %p65 = por %p63, %p64
      %p67 = scmp.ne.s32.totalorder %s50, %s66
      %p68 = scmp.eq.s32.totalorder %s28, 0
      %p69 = por %p67, %p68
      %s71 = sadd.s32 %s70, 1
      %p74 = scmp.eq.s32.totalorder %s22, 1
      %p75 = scmp.ne.s32.totalorder %s70, %s72
      %p76 = scmp.eq.s32.totalorder %s22, 0
      %p77 = por %p75, %p76
      %p78 = scmp.ne.s32.totalorder %s70, %s72
      %p79 = scmp.eq.s32.totalorder %s27, 1
      %p80 = por %p78, %p79
      %p81 = scmp.ne.s32.totalorder %s72, %s73
      %p82 = scmp.eq.s32.totalorder %s27, 0
      %p83 = por %p81, %p82
      %p84 = scmp.ne.s32.totalorder %s72, %s73
      %p85 = scmp.eq.s32.totalorder %s28, 1
      %p86 = por %p84, %p85
      %p88 = scmp.ne.s32.totalorder %s73, %s87
      %p89 = scmp.eq.s32.totalorder %s28, 0
      %p90 = por %p88, %p89
      %s92 = sadd.s32 %s91, 1
      %p95 = scmp.eq.s32.totalorder %s22, 1
      %p96 = scmp.ne.s32.totalorder %s91, %s93
      %p97 = scmp.eq.s32.totalorder %s22, 0
      %p98 = por %p96, %p97
      %p99 = scmp.ne.s32.totalorder %s91, %s93
      %p100 = scmp.eq.s32.totalorder %s27, 1
      %p101 = por %p99, %p100
      %p102 = scmp.ne.s32.totalorder %s93, %s94
      %p103 = scmp.eq.s32.totalorder %s27, 0
      %p104 = por %p102, %p103
      %p105 = scmp.ne.s32.totalorder %s93, %s94
      %p106 = scmp.eq.s32.totalorder %s28, 1
      %p107 = por %p105, %p106
      %p109 = scmp.ne.s32.totalorder %s94, %s108
      %p110 = scmp.eq.s32.totalorder %s28, 0
      %p111 = por %p109, %p110
      %s112 = ssub.s32 %s29, %s41
      %s113 = ssub.s32 %s30, %s37
      %s114 = sor.u32 %s112, %s113
      %p115 = scmp.eq.s32.totalorder %s114, 0
      %s117 = sadd.s32 %s116, 1
      %s118 = scalar_select %p115, %s116, %s117
      %p121 = pneg %p115
      %p122 = scmp.eq.s32.totalorder %s22, 1
      %p123 = por %p121, %p122
      %p124 = scmp.ne.s32.totalorder %s116, %s119
      %p125 = scmp.eq.s32.totalorder %s22, 0
      %p126 = por %p124, %p125
      %p127 = scmp.ne.s32.totalorder %s116, %s119
      %p128 = scmp.eq.s32.totalorder %s27, 1
      %p129 = por %p127, %p128
      %p130 = scmp.ne.s32.totalorder %s119, %s120
      %p131 = scmp.eq.s32.totalorder %s27, 0
      %p132 = por %p130, %p131
      %p133 = scmp.ne.s32.totalorder %s119, %s120
      %p134 = scmp.eq.s32.totalorder %s28, 1
      %p135 = por %p133, %p134
      %p137 = scmp.ne.s32.totalorder %s120, %s136
      %p138 = scmp.eq.s32.totalorder %s28, 0
      %p139 = por %p137, %p138
      %s140 = ssub.s32 %s29, %s41
      %s141 = ssub.s32 %s30, %s37
      %s142 = sor.u32 %s140, %s141
      %p143 = scmp.eq.s32.totalorder %s142, 0
      %s145 = sadd.s32 %s144, 1
      %s146 = scalar_select %p143, %s144, %s145
      %p149 = pneg %p143
      %p150 = scmp.eq.s32.totalorder %s22, 1
      %p151 = por %p149, %p150
      %p152 = scmp.ne.s32.totalorder %s144, %s147
      %p153 = scmp.eq.s32.totalorder %s22, 0
      %p154 = por %p152, %p153
      %p155 = scmp.ne.s32.totalorder %s144, %s147
      %p156 = scmp.eq.s32.totalorder %s27, 1
      %p157 = por %p155, %p156
      %p158 = scmp.ne.s32.totalorder %s147, %s148
      %p159 = scmp.eq.s32.totalorder %s27, 0
      %p160 = por %p158, %p159
      %p161 = scmp.ne.s32.totalorder %s147, %s148
      %p162 = scmp.eq.s32.totalorder %s28, 1
      %p163 = por %p161, %p162
      %p165 = scmp.ne.s32.totalorder %s148, %s164
      %p166 = scmp.eq.s32.totalorder %s28, 0
      %p167 = por %p165, %p166
      %s168 = ssub.s32 %s29, %s41
      %s169 = ssub.s32 %s30, %s37
      %s170 = sor.u32 %s168, %s169
      %p171 = scmp.eq.s32.totalorder %s170, 0
      %s173 = sadd.s32 %s172, 1
      %s174 = scalar_select %p171, %s172, %s173
      %p177 = pneg %p171
      %p178 = scmp.eq.s32.totalorder %s22, 1
      %p179 = por %p177, %p178
      %p180 = scmp.ne.s32.totalorder %s172, %s175
      %p181 = scmp.eq.s32.totalorder %s22, 0
      %p182 = por %p180, %p181
      %p183 = scmp.ne.s32.totalorder %s172, %s175
      %p184 = scmp.eq.s32.totalorder %s27, 1
      %p185 = por %p183, %p184
      %p186 = scmp.ne.s32.totalorder %s175, %s176
      %p187 = scmp.eq.s32.totalorder %s27, 0
      %p188 = por %p186, %p187
      %p189 = scmp.ne.s32.totalorder %s175, %s176
      %p190 = scmp.eq.s32.totalorder %s28, 1
      %p191 = por %p189, %p190
      %p193 = scmp.ne.s32.totalorder %s176, %s192
      %p194 = scmp.eq.s32.totalorder %s28, 0
      %p195 = por %p193, %p194
      %p196 = scmp.le.s32.totalorder 1, %s22
      %p197 = scmp.lt.s32.totalorder %s22, 3
      %p198 = pnand %p196, %p197
      %p199 = pneg %p198
      // Predicated region
      $region9: #{tpu_custom_call.1} parent=5 // pred_check
        _
      $region10: #{tpu_custom_call.1} parent=5 // pred_check_branch
        %201 = sbr.rel (%p198) target = $region12
      $region11: #{tpu_custom_call.1} parent=5 // pred_region
        %s202 = ssub.s32 %s22, 1
        // Predicated region
        $region13: #{tpu_custom_call.1} parent=11 // pred_check
          %p203 = pneg %p83
        $region14: #{tpu_custom_call.1} parent=11 // pred_check_branch
          %205 = sbr.rel (%p203) target = $region16
        $region15: #{tpu_custom_call.1} parent=11 // pred_region
          %s207 = ssub.s32 256, 256
          %208 = vsyncadd [#allocation6], %s207
          %s209 = sshll.u32 [#allocation5], 4
          %s210 = int_to_ptr.vmem [resolvable:$true] %s209
          %215 = dma.hbm_to_vmem [thread:$0]  %s1, 256, %s210, [#allocation6], 64, 64, 4
        $region16: #{tpu_custom_call.1} parent=11 // pred_fallthru
          _
        // Predicated region
        $region17: #{tpu_custom_call.1} parent=11 // pred_check
          %p216 = pneg %p104
        $region18: #{tpu_custom_call.1} parent=11 // pred_check_branch
          %218 = sbr.rel (%p216) target = $region20
        $region19: #{tpu_custom_call.1} parent=11 // pred_region
          _
        $region20: #{tpu_custom_call.1} parent=11 // pred_fallthru
          _
      $region12: #{tpu_custom_call.1} parent=5 // pred_fallthru
        _
      %p219 = scmp.lt.s32.totalorder %s22, 2
      // Predicated region
      $region21: #{tpu_custom_call.1} parent=5 // pred_check
        %p220 = pneg %p219
      $region22: #{tpu_custom_call.1} parent=5 // pred_check_branch
        %222 = sbr.rel (%p220) target = $region24
      $region23: #{tpu_custom_call.1} parent=5 // pred_region
        // Predicated region
        $region25: #{tpu_custom_call.1} parent=23 // pred_check
          %p223 = pneg %p56
        $region26: #{tpu_custom_call.1} parent=23 // pred_check_branch
          %225 = sbr.rel (%p223) target = $region28
        $region27: #{tpu_custom_call.1} parent=23 // pred_region
          %s226 = sand.u32 %s46, 1
          %s227 = scalar_lea.sflag [#allocation3], %s226
          %s228 = sand.u32 %s46, 1
          %s229 = smul.addr %s228, 8
          %s230 = scalar_lea.vmem [#allocation2], %s229
          %s232 = ssub.s32 128, 128
          %233 = vsyncadd %s227, %s232
          %s234 = sadd.s32 %s30, %s29
          %s235 = smul.addr %s234, 128
          %s236 = scalar_lea.hbm %s0, %s235
          %s238 = sshll.u32 %s230, 4
          %s239 = int_to_ptr.vmem [resolvable:$true] %s238
          %241 = dma.hbm_to_vmem [thread:$0]  %s236, 128, %s239, %s227
        $region28: #{tpu_custom_call.1} parent=23 // pred_fallthru
          _
      $region24: #{tpu_custom_call.1} parent=5 // pred_fallthru
        _
      %p242 = scmp.le.s32.totalorder 1, %s22
      %p243 = scmp.lt.s32.totalorder %s22, 3
      %p244 = pnand %p242, %p243
      %p245 = pneg %p244
      // Predicated region
      $region29: #{tpu_custom_call.1} parent=5 // pred_check
        _
      $region30: #{tpu_custom_call.1} parent=5 // pred_check_branch
        %247 = sbr.rel (%p244) target = $region32
      $region31: #{tpu_custom_call.1} parent=5 // pred_region
        %s248 = ssub.s32 %s22, 1
        %s249 = sand.u32 %s49, 1
        %s250 = scalar_lea.sflag [#allocation3], %s249
        %s251 = sand.u32 %s49, 1
        %s252 = smul.addr %s251, 8
        %s253 = scalar_lea.vmem [#allocation2], %s252
        // Predicated region
        $region33: #{tpu_custom_call.1} parent=31 // pred_check
          %p254 = pneg %p62
        $region34: #{tpu_custom_call.1} parent=31 // pred_check_branch
          %256 = sbr.rel (%p254) target = $region36
        $region35: #{tpu_custom_call.1} parent=31 // pred_region
          %257 = dma.done %s250, 128
        $region36: #{tpu_custom_call.1} parent=31 // pred_fallthru
          _
        // Predicated region
        $region37: #{tpu_custom_call.1} parent=31 // pred_check
          %p258 = pneg %p83
        $region38: #{tpu_custom_call.1} parent=31 // pred_check_branch
          %260 = sbr.rel (%p258) target = $region40
        $region39: #{tpu_custom_call.1} parent=31 // pred_region
          %261 = dma.done [#allocation6], 256
        $region40: #{tpu_custom_call.1} parent=31 // pred_fallthru
          _
        %s262 = sand.u32 %s49, 1
        %s263 = scalar_lea.sflag [#allocation3], %s262
        %s264 = sand.u32 %s49, 1
        %s265 = smul.addr %s264, 8
        %s266 = scalar_lea.vmem [#allocation2], %s265
        %p267 = pneg %p62
        %p268 = pneg %p59
        %p269 = pneg %p83
        %p270 = pneg %p80
        %p271 = pneg %p104
        %p272 = pneg %p101
        %p273 = pneg %p132
        %p274 = pneg %p129
        %s275 = sand.u32 %s119, 1
        %s276 = scalar_lea.sflag [#allocation4], %s275
        %s277 = sand.u32 %s119, 1
        %s278 = smul.addr %s277, 16
        %s279 = scalar_lea.vmem [#allocation7], %s278
        %p280 = pneg %p160
        %p281 = pneg %p157
        %s282 = sand.u32 %s27, 1
        %s283 = scalar_lea.sflag [#allocation9], %s282
        %s284 = sand.u32 %s147, 1
        %s285 = smul.addr %s284, 16
        %s286 = scalar_lea.vmem [#allocation8], %s285
        %p287 = pneg %p188
        %p288 = pneg %p185
        %s289 = sand.u32 %s27, 1
        %s290 = scalar_lea.sflag [#allocation9], %s289
        %s291 = sand.u32 %s175, 1
        %s292 = smul.addr %s291, 16
        %s293 = scalar_lea.vmem [#allocation10], %s292
        %v295 = vld [vmem:[%s253] sm:$0xff]
        %v296 = vpack.c.bf16 %v295, %v295
        %v297 = vld [vmem:[#allocation5] sm:$0xf]
        %v298 = vld [vmem:[#allocation5 + $0x4] sm:$0xf]
        %v299 = vld [vmem:[#allocation5 + $0x8] sm:$0xf]
        %v300 = vld [vmem:[#allocation5 + $0xc] sm:$0xf]
        %v301 = vld [vmem:[%s2] sm:$0x1]
        %v303 = vlaneseq
        %v304 = vshrl.u32 %v303, 7
        %v305 = vsub.s32 0, %v304
        %v306 = vrot.slane %v301, %v305
        %v312 = vunpack.c.l.b16 %v297
        %v313 = vunpack.c.l.b16 %v298
        %v314 = vunpack.c.l.b16 %v299
        %v315 = vunpack.c.l.b16 %v300
        %v316 = vpack.c.b16 %v313, %v312
        %v317 = vpack.c.b16 %v315, %v314
        %vm320 = vcmask 261120
        %v322 = vsel %vm320, %v296, 0
        %324 = vmatprep.subr.bf16.mxu0 0
        %325 = vmatpush1.bf16.msra.mxu0 %v316
        %326 = vmatprep.subr.bf16.mxu0 0
        %327 = vmatpush1.bf16.msra.mxu0 %v317
        %328 = vmatprep.subr.bf16.mxu0 0
        %329 = vmatpush1.bf16.msra.mxu0 0
        %330 = vmatprep.subr.bf16.mxu0 0
        %331 = vmatpush1.bf16.msra.mxu0 0
        %332 = vmatprep.subr.bf16.mxu0 0
        %333 = vmatpush1.bf16.msra.mxu0 0
        %334 = vmatprep.subr.bf16.mxu0 0
        %335 = vmatpush1.bf16.msra.mxu0 0
        %336 = vmatprep.subr.bf16.mxu0 0
        %337 = vmatpush1.bf16.msra.mxu0 0
        %338 = vmatprep.subr.bf16.mxu0 0
        %339 = vmatpush1.bf16.msra.mxu0 0
        %340 = vmatprep.subr.bf16.mxu0 0
        %341 = vmatpush1.bf16.msra.mxu0 0
        %342 = vmatprep.subr.bf16.mxu0 0
        %343 = vmatpush1.bf16.msra.mxu0 0
        %344 = vmatprep.subr.bf16.mxu0 0
        %345 = vmatpush1.bf16.msra.mxu0 0
        %346 = vmatprep.subr.bf16.mxu0 0
        %347 = vmatpush1.bf16.msra.mxu0 0
        %348 = vmatprep.subr.bf16.mxu0 0
        %349 = vmatpush1.bf16.msra.mxu0 0
        %350 = vmatprep.subr.bf16.mxu0 0
        %351 = vmatpush1.bf16.msra.mxu0 0
        %352 = vmatprep.subr.bf16.mxu0 0
        %353 = vmatpush1.bf16.msra.mxu0 0
        %354 = vmatprep.subr.bf16.mxu0 0
        %355 = vmatpush1.bf16.msra.mxu0 0
        %356 = vmatprep.mubr.bf16.mxu0 0
        %357 = vmatmul.mubr.bf16.gmra.mrb[0].mxu0 %v322
        %v358 = vpop.f32.mrb[0].mxu0
        %v359 = vadd.f32 %v306, %v358
        %v360 = vpop.f32.mrb[0].mxu0
        %v361 = vpop.f32.mrb[0].mxu0
        %v362 = vpop.f32.mrb[0].mxu0
        %363 = vdwg.mxu0
        %v364 = vmul.f32 %v359, 0.35355338
        %v365 = vpack.c.bf16 %v364, %v364
        %vm366 = vcmask 60416
        %367 = vst.msk [vmem:[%s279] sm:$0xf] %vm366, %v365
        %v368 = vpack.c.bf16 %v359, %v359
        %v370 = vunpack.c.l.b16 %v368
        %v371 = vpack.c.b16 %v370, %v370
        %372 = vrot.lane.b32.xlu0 %v371, 120
        %v373 = vpop.permute.xlu0 %372
        %375 = vst.msk [vmem:[%s286] sm:$0xf] %vm366, %v373
        %376 = vrot.lane.b32.xlu0 %v371, 112
        %v377 = vpop.permute.xlu0 %376
        %379 = vst.msk [vmem:[%s293] sm:$0xf] %vm366, %v377
        %v381 = vunpack.c.l.b16 %v365
        %v382 = vpack.c.b16 %v381, %v381
        %383 = vrot.lane.b32.xlu0 %v382, 104
        %v384 = vpop.permute.xlu0 %383
        %s386 = scalar_lea.vmem %s279, 4 [#allocation7]
        %387 = vst.msk [vmem:[%s386] sm:$0xf] %vm366, %v384
        %388 = vrot.lane.b32.xlu0 %v371, 96
        %v389 = vpop.permute.xlu0 %388
        %s391 = scalar_lea.vmem %s286, 4 [#allocation8]
        %392 = vst.msk [vmem:[%s391] sm:$0xf] %vm366, %v389
        %393 = vrot.lane.b32.xlu0 %v371, 88
        %v394 = vpop.permute.xlu0 %393
        %s396 = scalar_lea.vmem %s293, 4 [#allocation10]
        %397 = vst.msk [vmem:[%s396] sm:$0xf] %vm366, %v394
        %398 = vrot.lane.b32.xlu0 %v382, 80
        %v399 = vpop.permute.xlu0 %398
        %s401 = scalar_lea.vmem %s279, 8 [#allocation7]
        %402 = vst.msk [vmem:[%s401] sm:$0xf] %vm366, %v399
        %403 = vrot.lane.b32.xlu0 %v371, 72
        %v404 = vpop.permute.xlu0 %403
        %s406 = scalar_lea.vmem %s286, 8 [#allocation8]
        %407 = vst.msk [vmem:[%s406] sm:$0xf] %vm366, %v404
        %408 = vrot.lane.b32.xlu0 %v371, 64
        %v409 = vpop.permute.xlu0 %408
        %s411 = scalar_lea.vmem %s293, 8 [#allocation10]
        %412 = vst.msk [vmem:[%s411] sm:$0xf] %vm366, %v409
        %413 = vrot.lane.b32.xlu0 %v382, 56
        %v414 = vpop.permute.xlu0 %413
        %s416 = scalar_lea.vmem %s279, 12 [#allocation7]
        %417 = vst.msk [vmem:[%s416] sm:$0xf] %vm366, %v414
        %418 = vrot.lane.b32.xlu0 %v371, 48
        %v419 = vpop.permute.xlu0 %418
        %s421 = scalar_lea.vmem %s286, 12 [#allocation8]
        %422 = vst.msk [vmem:[%s421] sm:$0xf] %vm366, %v419
        %423 = vrot.lane.b32.xlu0 %v371, 40
        %v424 = vpop.permute.xlu0 %423
        %s426 = scalar_lea.vmem %s293, 12 [#allocation10]
        %427 = vst.msk [vmem:[%s426] sm:$0xf] %vm366, %v424
        %s428 = sand.u32 %s119, 1
        %s429 = scalar_lea.sflag [#allocation4], %s428
        %s430 = sand.u32 %s119, 1
        %s431 = smul.addr %s430, 16
        %s432 = scalar_lea.vmem [#allocation7], %s431
        %s433 = sand.u32 %s27, 1
        %s434 = scalar_lea.sflag [#allocation9], %s433
        %s435 = sand.u32 %s147, 1
        %s436 = smul.addr %s435, 16
        %s437 = scalar_lea.vmem [#allocation8], %s436
        %s438 = sand.u32 %s27, 1
        %s439 = scalar_lea.sflag [#allocation9], %s438
        %s440 = sand.u32 %s175, 1
        %s441 = smul.addr %s440, 16
        %s442 = scalar_lea.vmem [#allocation10], %s441
        // Predicated region
        $region41: #{tpu_custom_call.1} parent=31 // pred_check
          %p443 = pneg %p129
        $region42: #{tpu_custom_call.1} parent=31 // pred_check_branch
          %445 = sbr.rel (%p443) target = $region44
        $region43: #{tpu_custom_call.1} parent=31 // pred_region
          %s447 = ssub.s32 256, 256
          %448 = vsyncadd %s429, %s447
          %s449 = smul.addr %s31, 4
          %s450 = sadd.s32 %s32, %s449
          %s451 = smul.addr %s450, 64
          %s452 = scalar_lea.hbm %s3, %s451
          %s453 = sshll.u32 %s432, 4
          %s454 = int_to_ptr.vmem [resolvable:$true] %s453
          %459 = dma.vmem_to_hbm [thread:$0]  %s454, 256, %s452, %s429, 64, 64, 4
        $region44: #{tpu_custom_call.1} parent=31 // pred_fallthru
          _
        // Predicated region
        $region45: #{tpu_custom_call.1} parent=31 // pred_check
          %p460 = pneg %p157
        $region46: #{tpu_custom_call.1} parent=31 // pred_check_branch
          %462 = sbr.rel (%p460) target = $region48
        $region47: #{tpu_custom_call.1} parent=31 // pred_region
          %s464 = ssub.s32 256, 256
          %465 = vsyncadd %s434, %s464
          %s466 = smul.addr %s31, 4
          %s467 = sadd.s32 %s32, %s466
          %s468 = smul.addr %s467, 64
          %s469 = scalar_lea.hbm %s4, %s468
          %s470 = sshll.u32 %s437, 4
          %s471 = int_to_ptr.vmem [resolvable:$true] %s470
          %476 = dma.vmem_to_hbm [thread:$0]  %s471, 256, %s469, %s434, 64, 64, 4
        $region48: #{tpu_custom_call.1} parent=31 // pred_fallthru
          _
        // Predicated region
        $region49: #{tpu_custom_call.1} parent=31 // pred_check
          %p477 = pneg %p185
        $region50: #{tpu_custom_call.1} parent=31 // pred_check_branch
          %479 = sbr.rel (%p477) target = $region52
        $region51: #{tpu_custom_call.1} parent=31 // pred_region
          %s481 = ssub.s32 256, 256
          %482 = vsyncadd %s439, %s481
          %s483 = smul.addr %s31, 4
          %s484 = sadd.s32 %s32, %s483
          %s485 = smul.addr %s484, 64
          %s486 = scalar_lea.hbm %s5, %s485
          %s487 = sshll.u32 %s442, 4
          %s488 = int_to_ptr.vmem [resolvable:$true] %s487
          %493 = dma.vmem_to_hbm [thread:$0]  %s488, 256, %s486, %s439, 64, 64, 4
        $region52: #{tpu_custom_call.1} parent=31 // pred_fallthru
          _
      $region32: #{tpu_custom_call.1} parent=5 // pred_fallthru
        _
      %p494 = scmp.le.s32.totalorder 2, %s22
      // Predicated region
      $region53: #{tpu_custom_call.1} parent=5 // pred_check
        %p495 = pneg %p494
      $region54: #{tpu_custom_call.1} parent=5 // pred_check_branch
        %497 = sbr.rel (%p495) target = $region56
      $region55: #{tpu_custom_call.1} parent=5 // pred_region
        %s498 = ssub.s32 %s22, 2
        // Predicated region
        $region57: #{tpu_custom_call.1} parent=55 // pred_check
          %p499 = pneg %p135
        $region58: #{tpu_custom_call.1} parent=55 // pred_check_branch
          %501 = sbr.rel (%p499) target = $region60
        $region59: #{tpu_custom_call.1} parent=55 // pred_region
          %s502 = sand.u32 %s120, 1
          %s503 = scalar_lea.sflag [#allocation4], %s502
          %s504 = sand.u32 %s120, 1
          %s505 = smul.addr %s504, 16
          %s506 = scalar_lea.vmem [#allocation7], %s505
          %507 = dma.done %s503, 256
        $region60: #{tpu_custom_call.1} parent=55 // pred_fallthru
          _
        // Predicated region
        $region61: #{tpu_custom_call.1} parent=55 // pred_check
          %p508 = pneg %p163
        $region62: #{tpu_custom_call.1} parent=55 // pred_check_branch
          %510 = sbr.rel (%p508) target = $region64
        $region63: #{tpu_custom_call.1} parent=55 // pred_region
          %s511 = sand.u32 %s28, 1
          %s512 = scalar_lea.sflag [#allocation9], %s511
          %s513 = sand.u32 %s148, 1
          %s514 = smul.addr %s513, 16
          %s515 = scalar_lea.vmem [#allocation8], %s514
          %516 = dma.done %s512, 256
        $region64: #{tpu_custom_call.1} parent=55 // pred_fallthru
          _
        // Predicated region
        $region65: #{tpu_custom_call.1} parent=55 // pred_check
          %p517 = pneg %p191
        $region66: #{tpu_custom_call.1} parent=55 // pred_check_branch
          %519 = sbr.rel (%p517) target = $region68
        $region67: #{tpu_custom_call.1} parent=55 // pred_region
          %s520 = sand.u32 %s28, 1
          %s521 = scalar_lea.sflag [#allocation9], %s520
          %s522 = sand.u32 %s176, 1
          %s523 = smul.addr %s522, 16
          %s524 = scalar_lea.vmem [#allocation10], %s523
          %525 = dma.done %s521, 256
        $region68: #{tpu_custom_call.1} parent=55 // pred_fallthru
          _
      $region56: #{tpu_custom_call.1} parent=5 // pred_fallthru
        _
    $region6: #{tpu_custom_call.1} parent=1 // loop_footer
      %s26 = sadd.s32 1, %s22
    $region7: #{tpu_custom_call.1} parent=1 // loop_footer_branch
      %21 = sbr.rel target = $region3
    $region8: #{tpu_custom_call.1} parent=1 // loop_exit
      _
    %526 = vsyncpa [#allocation3], 1
    %s527 = scalar_lea.sflag [#allocation3], 1
    %528 = vsyncpa %s527, 1
    %529 = vsyncpa [#allocation6], 1
    %530 = vsyncpa [#allocation4], 1
    %s531 = scalar_lea.sflag [#allocation4], 1
    %532 = vsyncpa %s531, 1
    %533 = vsyncpa [#allocation9], 1
    %s534 = scalar_lea.sflag [#allocation9], 1
    %535 = vsyncpa %s534, 1

</llo_original>
